<compile_context>
chip_gen: v7x
topology: tpu7x:2x2x1
jax: 0.10.0
libtpu: 0.0.40
codegen_flags: <defaults>
</compile_context>

<pallas_src>
import jax
import jax.numpy as jnp
from jax.experimental import pallas as pl
from jax.experimental.pallas import tpu as pltpu


def _residual_kernel(xk_ref, xr_ref, w_ref, gb_ref, o_ref, acc_ref):
    # xk_ref: (B, tk)   k-th contraction slice of x (matmul operand)
    # xr_ref: (B, tn)   residual columns for this output tile (fetched once per j)
    # w_ref:  (tk, tn)  pre-transposed weight tile
    # gb_ref: (2, tn)   row 0 = gamma, row 1 = beta
    # o_ref:  (B, tn)   output tile
    # acc_ref:(B, tn)   f32 accumulator scratch
    k = pl.program_id(1)

    @pl.when(k == 0)
    def _():
        acc_ref[...] = jnp.zeros_like(acc_ref)

    xk = xk_ref[...]
    if xk.dtype != w_ref.dtype:
        xk = xk.astype(w_ref.dtype)  # bf16 MXU-operand path when weights are bf16
    acc_ref[...] += jnp.dot(xk, w_ref[...], preferred_element_type=jnp.float32)

    @pl.when(k == pl.num_programs(1) - 1)
    def _():
        y = acc_ref[...]
        inv_b = jnp.float32(1.0 / y.shape[0])
        mean = jnp.sum(y, axis=0, keepdims=True) * inv_b
        yc = y - mean                                   # centered (two-pass) variance
        var = jnp.sum(yc * yc, axis=0, keepdims=True) * inv_b
        scale = gb_ref[0:1, :] * jax.lax.rsqrt(var + jnp.float32(1e-5))  # EUP rsqrt
        # BN (scale/shift on centered y) + residual + ReLU, one lane-dense store.
        o_ref[...] = jnp.maximum(
            yc * scale + gb_ref[1:2, :] + xr_ref[...], 0.0
        ).astype(o_ref.dtype)


def prepare_params(w, gamma, beta, *, matmul_dtype=jnp.float32):
    """Init-time parameter prep (done ONCE, not per forward call).

    w:           (I, I) float32, PyTorch-style (out, in)
    gamma, beta: (I,)   float32
    Returns (w_t_padded, gb_packed):
      w_t_padded: (I_pad, I_pad) in matmul_dtype, transposed to (in, out), zero-padded
      gb_packed:  (2, I_pad) float32, row0=gamma (pad=1), row1=beta (pad=0)
    The Linear bias is intentionally dropped: training-mode BatchNorm subtracts the
    batch mean, so a per-feature constant bias cancels exactly.
    """
    i = w.shape[0]
    i_pad = ((i + 127) // 128) * 128
    pad = i_pad - i
    w_t = jnp.transpose(w)  # (in, out)
    if pad:
        w_t = jnp.pad(w_t, ((0, pad), (0, pad)))
        gamma = jnp.pad(gamma, (0, pad), constant_values=1.0)
        beta = jnp.pad(beta, (0, pad))
    w_t = w_t.astype(matmul_dtype)
    gb = jnp.stack([gamma, beta]).astype(jnp.float32)  # (2, I_pad)
    return w_t, gb


def residual_forward(x, w_t, gb, *, tn=None, tk=None):
    """Forward pass of the Residual block.

    x:   (B, I) float32
    w_t: (I_pad, I_pad) prepped weight (see prepare_params)
    gb:  (2, I_pad) packed gamma/beta
    """
    B, I = x.shape
    I_pad = w_t.shape[0]
    assert w_t.shape == (I_pad, I_pad) and gb.shape == (2, I_pad)
    assert I_pad % 128 == 0 and I <= I_pad

    pad = I_pad - I
    x_p = jnp.pad(x, ((0, 0), (0, pad))) if pad else x  # only x padded per call

    # Output-column tile: prefer >= 2 tiles (v7x megacore), as wide as possible.
    if tn is None:
        tn = I_pad
        for t in (512, 256, 128):
            if I_pad % t == 0 and I_pad // t >= 2:
                tn = t
                break
    # Contraction tile: largest nice divisor of I_pad.
    if tk is None:
        tk = I_pad
        for t in (512, 256, 128):
            if I_pad % t == 0:
                tk = t
                break
    assert tn % 128 == 0 and tk % 128 == 0
    assert I_pad % tn == 0 and I_pad % tk == 0
    grid_n = I_pad // tn
    grid_k = I_pad // tk

    # Scoped-VMEM budget: double-buffered per-tile working set + headroom, clamped
    # to a generation-aware cap (v7x has only 64 MiB per TensorCore).
    w_itemsize = jnp.dtype(w_t.dtype).itemsize
    work = 4 * (2 * B * tk       # x contraction slices (f32, double buffered)
                + 2 * B * tn     # x residual tile
                + 2 * 2 * tn     # gamma/beta
                + 2 * B * tn     # output tile
                + B * tn)        # accumulator scratch
    work += w_itemsize * 2 * tk * tn   # weight tile (double buffered)
    try:
        cap = max(int(pltpu.get_tpu_info().vmem_capacity_bytes) * 3 // 4, 32 << 20)
    except Exception:
        cap = 48 << 20  # safe on every generation
    vmem_limit = int(min(max(work + (4 << 20), 16 << 20), cap))

    out = pl.pallas_call(
        _residual_kernel,
        out_shape=jax.ShapeDtypeStruct((B, I_pad), jnp.float32),
        grid=(grid_n, grid_k),                       # reduction axis last
        in_specs=[
            pl.BlockSpec((B, tk), lambda j, k: (0, k)),    # x, k-th K-slice
            pl.BlockSpec((B, tn), lambda j, k: (0, j)),    # x residual cols (1 fetch per j)
            pl.BlockSpec((tk, tn), lambda j, k: (k, j)),   # weight tile
            pl.BlockSpec((2, tn), lambda j, k: (0, j)),    # packed gamma/beta
        ],
        out_specs=pl.BlockSpec((B, tn), lambda j, k: (0, j)),
        scratch_shapes=[pltpu.VMEM((B, tn), jnp.float32)],
        compiler_params=pltpu.CompilerParams(
            dimension_semantics=("parallel", "arbitrary"),
            vmem_limit_bytes=vmem_limit,
        ),
    )(x_p, x_p, w_t, gb)

    return out[:, :I] if pad else out


def reference_forward(x, w, b, gamma, beta, eps=1e-5):
    # Pure-JAX reference matching the PyTorch module (w is PyTorch-style (out, in)).
    y = x @ w.T + b
    mean = jnp.mean(y, axis=0, keepdims=True)
    var = jnp.mean((y - mean) ** 2, axis=0, keepdims=True)
    y_bn = (y - mean) / jnp.sqrt(var + eps) * gamma + beta
    return jnp.maximum(y_bn + x, 0.0)


def _make_params(key, i):
    """PyTorch-like deterministic init."""
    kw, kb = jax.random.split(key)
    bound = 1.0 / jnp.sqrt(jnp.float32(i))
    w = jax.random.uniform(kw, (i, i), minval=-bound, maxval=bound, dtype=jnp.float32)
    b = jax.random.uniform(kb, (i,), minval=-bound, maxval=bound, dtype=jnp.float32)
    gamma = jnp.ones((i,), dtype=jnp.float32)
    beta = jnp.zeros((i,), dtype=jnp.float32)
    return w, b, gamma, beta


if __name__ == "__main__":
    # TODO(synk): BatchNorm1d running_mean/running_var buffer updates (training side
    # effect) are not modeled; only the returned forward value is computed.
    key = jax.random.PRNGKey(0)
    k1, k2, k3, k4, k5, k6 = jax.random.split(key, 6)

    # Case 1: small shape implied by the module (batch=8, hidden=32) -> padded to 128 lanes.
    B, I = 8, 32
    x = jax.random.normal(k1, (B, I), dtype=jnp.float32)
    w, b, gamma, beta = _make_params(k2, I)
    w_t, gb = prepare_params(w, gamma, beta)
    out = jax.block_until_ready(residual_forward(x, w_t, gb))
    ref = reference_forward(x, w, b, gamma, beta)
    assert out.shape == (B, I)
    assert jnp.allclose(out, ref, atol=1e-4, rtol=1e-4), "mismatch vs reference (I=32)"

    # Case 2: already lane-dense hidden=128 (no padding path).
    B2, I2 = 8, 128
    x2 = jax.random.normal(k3, (B2, I2), dtype=jnp.float32)
    w2, b2, g2, be2 = _make_params(k4, I2)
    w2_t, gb2 = prepare_params(w2, g2, be2)
    out2 = jax.block_until_ready(residual_forward(x2, w2_t, gb2))
    ref2 = reference_forward(x2, w2, b2, g2, be2)
    assert out2.shape == (B2, I2)
    assert jnp.allclose(out2, ref2, atol=1e-4, rtol=1e-4), "mismatch vs reference (I=128)"

    # Case 3: multi-tile grid (2 column tiles x 2 K tiles) exercising the accumulator path.
    B3, I3 = 16, 256
    x3 = jax.random.normal(k5, (B3, I3), dtype=jnp.float32)
    w3, b3, g3, be3 = _make_params(k6, I3)
    w3_t, gb3 = prepare_params(w3, g3, be3)
    out3 = jax.block_until_ready(residual_forward(x3, w3_t, gb3, tn=128, tk=128))
    ref3 = reference_forward(x3, w3, b3, g3, be3)
    assert out3.shape == (B3, I3)
    assert jnp.allclose(out3, ref3, atol=1e-4, rtol=1e-4), "mismatch vs reference (I=256, tiled)"

    # Case 4: bf16 MXU-operand perf path (v5e/v6e HBM-bound shapes), looser tolerance.
    w2_t_bf, gb2_bf = prepare_params(w2, g2, be2, matmul_dtype=jnp.bfloat16)
    out4 = jax.block_until_ready(residual_forward(x2, w2_t_bf, gb2_bf))
    assert jnp.allclose(out4, ref2, atol=5e-2, rtol=5e-2), "mismatch vs reference (bf16 path)"

    print("KERNEL_OK")
</pallas_src>

<mosaic_0001>
module attributes {stable_mosaic.version = 11 : i64} {
  func.func @_residual_kernel(%arg0: i32, %arg1: i32, %arg2: memref<8x128xf32, #tpu.memory_space<vmem>>, %arg3: memref<8x128xf32, #tpu.memory_space<vmem>>, %arg4: memref<128x128xf32, #tpu.memory_space<vmem>>, %arg5: memref<2x128xf32, #tpu.memory_space<vmem>>, %arg6: memref<8x128xf32, #tpu.memory_space<vmem>>, %arg7: memref<8x128xf32, #tpu.memory_space<vmem>>) attributes {dimension_semantics = [#tpu.dimension_semantics<parallel>, #tpu.dimension_semantics<arbitrary>], iteration_bounds = array<i64: 1, 1>, scalar_prefetch = 0 : i64, scratch_operands = 1 : i64, tpu.core_type = #tpu.core_type<tc>, window_params = [{transform_indices = @transform_0, window_bounds = array<i64: 8, 128>}, {transform_indices = @transform_1, window_bounds = array<i64: 8, 128>}, {transform_indices = @transform_2, window_bounds = array<i64: 128, 128>}, {transform_indices = @transform_3, window_bounds = array<i64: 2, 128>}, {transform_indices = @transform_4, window_bounds = array<i64: 8, 128>}]} {
    %c0_i32 = arith.constant 0 : i32
    %0 = arith.cmpi eq, %arg1, %c0_i32 : i32
    %1 = arith.extui %0 : i1 to i32
    %c0_i32_0 = arith.constant 0 : i32
    %2 = arith.cmpi ne, %1, %c0_i32_0 : i32
    scf.if %2 {
      %cst_10 = arith.constant 0.000000e+00 : f32
      %12 = vector.broadcast %cst_10 : f32 to vector<8x128xf32>
      %c0_11 = arith.constant 0 : index
      %c0_12 = arith.constant 0 : index
      %13 = vector.load %arg7[%c0_11, %c0_12] : memref<8x128xf32, #tpu.memory_space<vmem>>, vector<8x128xf32>
      tpu.vector_store %arg7[%c0_11, %c0_12], %12 {strides = array<i32>} : memref<8x128xf32, #tpu.memory_space<vmem>>, vector<8x128xf32>,
    } else {
    }
    %c0 = arith.constant 0 : index
    %c0_1 = arith.constant 0 : index
    %3 = vector.load %arg2[%c0, %c0_1] : memref<8x128xf32, #tpu.memory_space<vmem>>, vector<8x128xf32>
    %c0_2 = arith.constant 0 : index
    %c0_3 = arith.constant 0 : index
    %4 = vector.load %arg7[%c0_2, %c0_3] : memref<8x128xf32, #tpu.memory_space<vmem>>, vector<8x128xf32>
    %c0_4 = arith.constant 0 : index
    %c0_5 = arith.constant 0 : index
    %5 = vector.load %arg4[%c0_4, %c0_5] : memref<128x128xf32, #tpu.memory_space<vmem>>, vector<128x128xf32>
    %cst = arith.constant dense<0.000000e+00> : vector<8x128xf32>
    %6 = tpu.matmul %3, %5, %cst {dimension_numbers = #tpu.dot_dimension_numbers<[1], [0], [0], [1], [0, 0, 1, 1], [], []>} : vector<8x128xf32>, vector<128x128xf32>, vector<8x128xf32> -> vector<8x128xf32>
    %7 = arith.addf %4, %6 : vector<8x128xf32>
    %c0_6 = arith.constant 0 : index
    %c0_7 = arith.constant 0 : index
    %8 = vector.load %arg7[%c0_6, %c0_7] : memref<8x128xf32, #tpu.memory_space<vmem>>, vector<8x128xf32>
    tpu.vector_store %arg7[%c0_6, %c0_7], %7 {strides = array<i32>} : memref<8x128xf32, #tpu.memory_space<vmem>>, vector<8x128xf32>,
    %c0_i32_8 = arith.constant 0 : i32
    %9 = arith.cmpi eq, %arg1, %c0_i32_8 : i32
    %10 = arith.extui %9 : i1 to i32
    %c0_i32_9 = arith.constant 0 : i32
    %11 = arith.cmpi ne, %10, %c0_i32_9 : i32
    scf.if %11 {
      %c0_10 = arith.constant 0 : index
      %c0_11 = arith.constant 0 : index
      %12 = vector.load %arg7[%c0_10, %c0_11] : memref<8x128xf32, #tpu.memory_space<vmem>>, vector<8x128xf32>
      %cst_12 = arith.constant dense<0.000000e+00> : vector<128xf32>
      %13 = vector.multi_reduction <add>, %12, %cst_12 [0] : vector<8x128xf32> to vector<128xf32>
      %14 = vector.shape_cast %13 : vector<128xf32> to vector<1x128xf32>
      %cst_13 = arith.constant 1.250000e-01 : f32
      %15 = vector.broadcast %cst_13 : f32 to vector<1x128xf32>
      %16 = arith.mulf %14, %15 : vector<1x128xf32>
      %17 = vector.broadcast %16 : vector<1x128xf32> to vector<8x128xf32>
      %18 = arith.subf %12, %17 : vector<8x128xf32>
      %19 = arith.mulf %18, %18 : vector<8x128xf32>
      %cst_14 = arith.constant dense<0.000000e+00> : vector<128xf32>
      %20 = vector.multi_reduction <add>, %19, %cst_14 [0] : vector<8x128xf32> to vector<128xf32>
      %21 = vector.shape_cast %20 : vector<128xf32> to vector<1x128xf32>
      %cst_15 = arith.constant 1.250000e-01 : f32
      %22 = vector.broadcast %cst_15 : f32 to vector<1x128xf32>
      %23 = arith.mulf %21, %22 : vector<1x128xf32>
      %c0_16 = arith.constant 0 : index
      %c0_17 = arith.constant 0 : index
      %24 = vector.load %arg5[%c0_16, %c0_17] : memref<2x128xf32, #tpu.memory_space<vmem>>, vector<1x128xf32>
      %cst_18 = arith.constant 9.99999974E-6 : f32
      %25 = vector.broadcast %cst_18 : f32 to vector<1x128xf32>
      %26 = arith.addf %23, %25 : vector<1x128xf32>
      %27 = math.rsqrt %26 : vector<1x128xf32>
      %28 = arith.mulf %24, %27 : vector<1x128xf32>
      %29 = vector.broadcast %28 : vector<1x128xf32> to vector<8x128xf32>
      %30 = arith.mulf %18, %29 : vector<8x128xf32>
      %c1 = arith.constant 1 : index
      %c0_19 = arith.constant 0 : index
      %31 = vector.load %arg5[%c1, %c0_19] : memref<2x128xf32, #tpu.memory_space<vmem>>, vector<1x128xf32>
      %32 = vector.broadcast %31 : vector<1x128xf32> to vector<8x128xf32>
      %33 = arith.addf %30, %32 : vector<8x128xf32>
      %c0_20 = arith.constant 0 : index
      %c0_21 = arith.constant 0 : index
      %34 = vector.load %arg3[%c0_20, %c0_21] : memref<8x128xf32, #tpu.memory_space<vmem>>, vector<8x128xf32>
      %35 = arith.addf %33, %34 : vector<8x128xf32>
      %cst_22 = arith.constant 0.000000e+00 : f32
      %36 = vector.broadcast %cst_22 : f32 to vector<8x128xf32>
      %37 = arith.maximumf %35, %36 : vector<8x128xf32>
      %c0_23 = arith.constant 0 : index
      %c0_24 = arith.constant 0 : index
      %38 = vector.load %arg6[%c0_23, %c0_24] : memref<8x128xf32, #tpu.memory_space<vmem>>, vector<8x128xf32>
      tpu.vector_store %arg6[%c0_23, %c0_24], %37 {strides = array<i32>} : memref<8x128xf32, #tpu.memory_space<vmem>>, vector<8x128xf32>,
    } else {
    }
    return
  }
  func.func @transform_0(%arg0: i32, %arg1: i32) -> (i32, i32) {
    %c0_i32 = arith.constant 0 : i32
    %c0_i32_0 = arith.constant 0 : i32
    return %c0_i32, %arg1 : i32, i32
  }
  func.func @transform_1(%arg0: i32, %arg1: i32) -> (i32, i32) {
    %c0_i32 = arith.constant 0 : i32
    %c0_i32_0 = arith.constant 0 : i32
    return %c0_i32, %arg0 : i32, i32
  }
  func.func @transform_2(%arg0: i32, %arg1: i32) -> (i32, i32) {
    %c0_i32 = arith.constant 0 : i32
    return %arg1, %arg0 : i32, i32
  }
  func.func @transform_3(%arg0: i32, %arg1: i32) -> (i32, i32) {
    %c0_i32 = arith.constant 0 : i32
    %c0_i32_0 = arith.constant 0 : i32
    return %c0_i32, %arg0 : i32, i32
  }
  func.func @transform_4(%arg0: i32, %arg1: i32) -> (i32, i32) {
    %c0_i32 = arith.constant 0 : i32
    %c0_i32_0 = arith.constant 0 : i32
    return %c0_i32, %arg0 : i32, i32
  }
}

</mosaic_0001>

<llo_original>
// kernel: tpu_custom_call.1
$region0: #{tpu_custom_call.1}
  #allocation0 [shape = 'u32[]', space=smem, size = 0x4, offset = 0x4, fixed_abs, tag = 'smem constant byte address 0x4 - core index']
  #allocation1 [shape = 'u32[144,128]{1,0:T(1,128)}', space=vmem, size = 0x12000, scoped, tag = 'internal scratch']
  #allocation2 [shape = 'f32[8,128]{1,0:T(8,128)}', space=vmem, size = 0x1000, scoped, tag = 'scratch operand']
  %s0 = inlined_call_operand.hbm [shape: f32[8,128], index: 0, kind: input, shape index: {}]
  %s1 = inlined_call_operand.hbm [shape: f32[8,128], index: 1, kind: input, shape index: {}]
  %s2 = inlined_call_operand.hbm [shape: f32[128,128], index: 2, kind: input, shape index: {}]
  %s3 = inlined_call_operand.vmem [shape: f32[2,128], index: 3, kind: input, shape index: {}]
  %s4 = inlined_call_operand.hbm [shape: f32[8,128], index: 4, kind: output, shape index: {}]
  %s5 = sld [smem:[#allocation0]]
  $region46: #{tpu_custom_call.1} parent=0
    _
  %s7 = ssub.s32 1, %s5
  %s8 = scalar_select 0, %s7, %s5
  $region1: #{tpu_custom_call.1} parent=0
    #allocation3 [shape = 'u8[4096]{0}', space=vmem, size = 0x1000, scoped, tag = 'input window, operand 0, single buffered']
    #allocation4 [shape = 's32[1]{0}', space=sflag, size = 0x4, scoped, tag = 'scoped memory for tpu_custom_call.1']
    #allocation5 [shape = 's32[1]{0}', space=sflag, size = 0x4, scoped, tag = 'scoped memory for tpu_custom_call.1']
    #allocation6 [shape = 'u8[4096]{0}', space=vmem, size = 0x1000, scoped, tag = 'input window, operand 1, single buffered']
    #allocation7 [shape = 's32[1]{0}', space=sflag, size = 0x4, scoped, tag = 'scoped memory for tpu_custom_call.1']
    #allocation8 [shape = 'u8[65536]{0}', space=vmem, size = 0x10000, scoped, tag = 'input window, operand 2, single buffered']
    #allocation9 [shape = 'u8[4096]{0}', space=vmem, size = 0x1000, scoped, tag = 'output window, operand 0, single buffered']
    %9 = vsyncpa [#allocation4], 0
    %10 = vsyncpa [#allocation7], 0
    %11 = vsyncpa [#allocation5], 0
    // Predicated region
    $region2: #{tpu_custom_call.1} parent=1 // pred_check
      _
    $region3: #{tpu_custom_call.1} parent=1 // pred_check_branch
      %13 = sbr.rel (0) target = $region5
    $region4: #{tpu_custom_call.1} parent=1 // pred_region
      %s15 = ssub.s32 128, 128
      %16 = vsyncadd [#allocation4], %s15
      %s18 = sshll.u32 [#allocation3], 4
      %s19 = int_to_ptr.vmem [resolvable:$true] %s18
      %21 = dma.hbm_to_vmem [thread:$0]  %s0, 128, %s19, [#allocation4]
    $region5: #{tpu_custom_call.1} parent=1 // pred_fallthru
      _
    // Predicated region
    $region6: #{tpu_custom_call.1} parent=1 // pred_check
      _
    $region7: #{tpu_custom_call.1} parent=1 // pred_check_branch
      %23 = sbr.rel (0) target = $region9
    $region8: #{tpu_custom_call.1} parent=1 // pred_region
      %s25 = ssub.s32 128, 128
      %26 = vsyncadd [#allocation7], %s25
      %s28 = sshll.u32 [#allocation6], 4
      %s29 = int_to_ptr.vmem [resolvable:$true] %s28
      %31 = dma.hbm_to_vmem [thread:$0]  %s1, 128, %s29, [#allocation7]
    $region9: #{tpu_custom_call.1} parent=1 // pred_fallthru
      _
    // Predicated region
    $region10: #{tpu_custom_call.1} parent=1 // pred_check
      _
    $region11: #{tpu_custom_call.1} parent=1 // pred_check_branch
      %33 = sbr.rel (0) target = $region13
    $region12: #{tpu_custom_call.1} parent=1 // pred_region
      %s35 = ssub.s32 2048, 2048
      %36 = vsyncadd [#allocation7], %s35
      %s37 = sshll.u32 [#allocation8], 4
      %s38 = int_to_ptr.vmem [resolvable:$true] %s37
      %43 = dma.hbm_to_vmem [thread:$0]  %s2, 2048, %s38, [#allocation7], 128, 128, 8
    $region13: #{tpu_custom_call.1} parent=1 // pred_fallthru
      _
    // Predicated region
    $region14: #{tpu_custom_call.1} parent=1 // pred_check
      _
    $region15: #{tpu_custom_call.1} parent=1 // pred_check_branch
      %45 = sbr.rel (0) target = $region17
    $region16: #{tpu_custom_call.1} parent=1 // pred_region
      _
    $region17: #{tpu_custom_call.1} parent=1 // pred_fallthru
      _
    // Predicated region
    $region18: #{tpu_custom_call.1} parent=1 // pred_check
      _
    $region19: #{tpu_custom_call.1} parent=1 // pred_check_branch
      %47 = sbr.rel (0) target = $region21
    $region20: #{tpu_custom_call.1} parent=1 // pred_region
      %48 = dma.done [#allocation4], 128
    $region21: #{tpu_custom_call.1} parent=1 // pred_fallthru
      _
    // Predicated region
    $region22: #{tpu_custom_call.1} parent=1 // pred_check
      _
    $region23: #{tpu_custom_call.1} parent=1 // pred_check_branch
      %50 = sbr.rel (0) target = $region25
    $region24: #{tpu_custom_call.1} parent=1 // pred_region
      %51 = dma.done [#allocation7], 128
    $region25: #{tpu_custom_call.1} parent=1 // pred_fallthru
      _
    // Predicated region
    $region26: #{tpu_custom_call.1} parent=1 // pred_check
      _
    $region27: #{tpu_custom_call.1} parent=1 // pred_check_branch
      %53 = sbr.rel (0) target = $region29
    $region28: #{tpu_custom_call.1} parent=1 // pred_region
      %54 = dma.done [#allocation7], 2048
    $region29: #{tpu_custom_call.1} parent=1 // pred_fallthru
      _
    %p55 = scmp.eq.s32.totalorder 0, 0
    // Predicated region
    $region30: #{tpu_custom_call.1} parent=1 // pred_check
      %p56 = pneg %p55
    $region31: #{tpu_custom_call.1} parent=1 // pred_check_branch
      %58 = sbr.rel (%p56) target = $region33
    $region32: #{tpu_custom_call.1} parent=1 // pred_region
      %59 = vst [vmem:[#allocation2] sm:$0xff] 0.0
    $region33: #{tpu_custom_call.1} parent=1 // pred_fallthru
      _
    %v60 = vld [vmem:[#allocation3] sm:$0xff]
    %v61 = vld [vmem:[#allocation2] sm:$0xff]
    %v62 = vld [vmem:[#allocation8] sm:$0xff]
    %v63 = vld [vmem:[#allocation8 + $0x8] sm:$0xff]
    %v64 = vld [vmem:[#allocation8 + $0x10] sm:$0xff]
    %v65 = vld [vmem:[#allocation8 + $0x18] sm:$0xff]
    %v66 = vld [vmem:[#allocation8 + $0x20] sm:$0xff]
    %v67 = vld [vmem:[#allocation8 + $0x28] sm:$0xff]
    %v68 = vld [vmem:[#allocation8 + $0x30] sm:$0xff]
    %v69 = vld [vmem:[#allocation8 + $0x38] sm:$0xff]
    %v70 = vld [vmem:[#allocation8 + $0x40] sm:$0xff]
    %v71 = vld [vmem:[#allocation8 + $0x48] sm:$0xff]
    %v72 = vld [vmem:[#allocation8 + $0x50] sm:$0xff]
    %v73 = vld [vmem:[#allocation8 + $0x58] sm:$0xff]
    %v74 = vld [vmem:[#allocation8 + $0x60] sm:$0xff]
    %v75 = vld [vmem:[#allocation8 + $0x68] sm:$0xff]
    %v76 = vld [vmem:[#allocation8 + $0x70] sm:$0xff]
    %v77 = vld [vmem:[#allocation8 + $0x78] sm:$0xff]
    %78 = vmatprep.subr.mxu0 0.0
    %79 = vmatpush1.msra.mxu0 %v62
    %80 = vmatprep.subr.mxu0 0.0
    %81 = vmatpush1.msra.mxu0 %v63
    %82 = vmatprep.subr.mxu0 0.0
    %83 = vmatpush1.msra.mxu0 %v64
    %84 = vmatprep.subr.mxu0 0.0
    %85 = vmatpush1.msra.mxu0 %v65
    %86 = vmatprep.subr.mxu0 0.0
    %87 = vmatpush1.msra.mxu0 %v66
    %88 = vmatprep.subr.mxu0 0.0
    %89 = vmatpush1.msra.mxu0 %v67
    %90 = vmatprep.subr.mxu0 0.0
    %91 = vmatpush1.msra.mxu0 %v68
    %92 = vmatprep.subr.mxu0 0.0
    %93 = vmatpush1.msra.mxu0 %v69
    %94 = vmatprep.subr.mxu0 0.0
    %95 = vmatpush1.msra.mxu0 %v70
    %96 = vmatprep.subr.mxu0 0.0
    %97 = vmatpush1.msra.mxu0 %v71
    %98 = vmatprep.subr.mxu0 0.0
    %99 = vmatpush1.msra.mxu0 %v72
    %100 = vmatprep.subr.mxu0 0.0
    %101 = vmatpush1.msra.mxu0 %v73
    %102 = vmatprep.subr.mxu0 0.0
    %103 = vmatpush1.msra.mxu0 %v74
    %104 = vmatprep.subr.mxu0 0.0
    %105 = vmatpush1.msra.mxu0 %v75
    %106 = vmatprep.subr.mxu0 0.0
    %107 = vmatpush1.msra.mxu0 %v76
    %108 = vmatprep.subr.mxu0 0.0
    %109 = vmatpush1.msra.mxu0 %v77
    %110 = vmatprep.subr.mxu0 0.0
    %111 = vmatpush1.msra.mxu0 0.0
    %112 = vmatprep.subr.mxu0 0.0
    %113 = vmatpush1.msra.mxu0 0.0
    %114 = vmatprep.subr.mxu0 0.0
    %115 = vmatpush1.msra.mxu0 0.0
    %116 = vmatprep.subr.mxu0 0.0
    %117 = vmatpush1.msra.mxu0 0.0
    %118 = vmatprep.subr.mxu0 0.0
    %119 = vmatpush1.msra.mxu0 0.0
    %120 = vmatprep.subr.mxu0 0.0
    %121 = vmatpush1.msra.mxu0 0.0
    %122 = vmatprep.subr.mxu0 0.0
    %123 = vmatpush1.msra.mxu0 0.0
    %124 = vmatprep.subr.mxu0 0.0
    %125 = vmatpush1.msra.mxu0 0.0
    %126 = vmatprep.subr.mxu0 0.0
    %127 = vmatpush1.msra.mxu0 0.0
    %128 = vmatprep.subr.mxu0 0.0
    %129 = vmatpush1.msra.mxu0 0.0
    %130 = vmatprep.subr.mxu0 0.0
    %131 = vmatpush1.msra.mxu0 0.0
    %132 = vmatprep.subr.mxu0 0.0
    %133 = vmatpush1.msra.mxu0 0.0
    %134 = vmatprep.subr.mxu0 0.0
    %135 = vmatpush1.msra.mxu0 0.0
    %136 = vmatprep.subr.mxu0 0.0
    %137 = vmatpush1.msra.mxu0 0.0
    %138 = vmatprep.subr.mxu0 0.0
    %139 = vmatpush1.msra.mxu0 0.0
    %140 = vmatprep.subr.mxu0 0.0
    %141 = vmatpush1.msra.mxu0 0.0
    %142 = vmatprep.mubr.f32.mxu0 0.0
    %143 = vmatmul.mubr.f32.gmra.mrb[0].mxu0 %v60
    %v144 = vpop.f32.mrb[0].mxu0
    %v145 = vadd.f32 0.0, %v144
    %v146 = vpop.f32.mrb[0].mxu0
    %147 = vdwg.mxu0
    %v148 = vadd.f32 %v61, %v145
    %149 = vst [vmem:[#allocation2] sm:$0xff] %v148
    // Predicated region
    $region34: #{tpu_custom_call.1} parent=1 // pred_check
      %p150 = pneg %p55
    $region35: #{tpu_custom_call.1} parent=1 // pred_check_branch
      %152 = sbr.rel (%p150) target = $region37
    $region36: #{tpu_custom_call.1} parent=1 // pred_region
      %v153 = vld [vmem:[#allocation2] sm:$0xff]
      %v154 = vrot.slane %v153, 4
      %v155 = vadd.f32 %v153, %v154
      %v156 = vrot.slane %v155, 2
      %v157 = vadd.f32 %v155, %v156
      %v158 = vrot.slane %v157, 1
      %v159 = vadd.f32 %v157, %v158
      %v160 = vmul.f32 %v159, 0.125
      %v161 = vsub.f32 %v153, %v160
      %v162 = vmul.f32 %v161, %v161
      %v163 = vrot.slane %v162, 4
      %v164 = vadd.f32 %v162, %v163
      %v165 = vrot.slane %v164, 2
      %v166 = vadd.f32 %v164, %v165
      %v167 = vrot.slane %v166, 1
      %v168 = vadd.f32 %v166, %v167
      %v169 = vmul.f32 %v168, 0.125
      %v170 = vld [vmem:[%s3] sm:$0x1]
      %v171 = vadd.f32 %v169, 1e-05
      %v172 = vrsqrt.pop %v171
      %v173 = vmul.f32 %v170, %v172
      %v174 = vlaneseq
      %v175 = vshrl.u32 %v174, 7
      %v176 = vsub.s32 0, %v175
      %v177 = vrot.slane %v173, %v176
      %v178 = vmul.f32 %v161, %v177
      %v179 = vld [vmem:[%s3 + $0x1] sm:$0x1]
      %v180 = vlaneseq
      %v181 = vshrl.u32 %v180, 7
      %v182 = vsub.s32 0, %v181
      %v183 = vrot.slane %v179, %v182
      %v184 = vadd.f32 %v178, %v183
      %v185 = vld [vmem:[#allocation6] sm:$0xff]
      %v186 = vadd.f32 %v184, %v185
      %v187 = vmax.f32 %v186, 0.0
      %188 = vst [vmem:[#allocation9] sm:$0xff] %v187
    $region37: #{tpu_custom_call.1} parent=1 // pred_fallthru
      _
    // Predicated region
    $region38: #{tpu_custom_call.1} parent=1 // pred_check
      _
    $region39: #{tpu_custom_call.1} parent=1 // pred_check_branch
      %190 = sbr.rel (0) target = $region41
    $region40: #{tpu_custom_call.1} parent=1 // pred_region
      %s192 = ssub.s32 128, 128
      %193 = vsyncadd [#allocation5], %s192
      %s195 = sshll.u32 [#allocation9], 4
      %s196 = int_to_ptr.vmem [resolvable:$true] %s195
      %198 = dma.vmem_to_hbm [thread:$0]  %s196, 128, %s4, [#allocation5]
    $region41: #{tpu_custom_call.1} parent=1 // pred_fallthru
      _
    // Predicated region
    $region42: #{tpu_custom_call.1} parent=1 // pred_check
      _
    $region43: #{tpu_custom_call.1} parent=1 // pred_check_branch
      %200 = sbr.rel (0) target = $region45
    $region44: #{tpu_custom_call.1} parent=1 // pred_region
      %201 = dma.done [#allocation5], 128
    $region45: #{tpu_custom_call.1} parent=1 // pred_fallthru
      _
    %202 = vsyncpa [#allocation4], 1
    %203 = vsyncpa [#allocation7], 1
    %204 = vsyncpa [#allocation5], 1

</llo_original>
